<compile_context>
chip_gen: v7x
topology: tpu7x:2x2x1
jax: 0.10.0
libtpu: 0.0.40
codegen_flags: <defaults>
</compile_context>

<pallas_src>
import jax
import jax.numpy as jnp
from jax.experimental import pallas as pl
from jax.experimental.pallas import tpu as pltpu

_LANE = 128                    # lane width: last-dim tile multiple (lane-dense stores)
_SUB = 32                      # int8 packs 4 rows/sublane -> row-tile multiple of 32
_PARAM_ROW_BYTES = _LANE * 4   # a (TR, 2) f32 block pads its lane axis to 128


def _ceil_to(a, m):
    return -(-a // m) * m


def _floor_to(a, m):
    return (a // m) * m


def _dequant_kernel(x_ref, p_ref, o_ref):
    # x_ref: (TR, TC) int8; p_ref: (TR, 2) f32 = [scale, zero_point]; o_ref: (TR, TC).
    x = x_ref[...].astype(jnp.float32)
    p = p_ref[...]
    scale = p[:, 0:1]          # (TR, 1) -> lane-broadcast over TC
    zp = p[:, 1:2]
    o_ref[...] = ((x - zp) * scale).astype(o_ref.dtype)


def _dequant_ref(x_int8, scale, zero_point, out_dtype=jnp.float32):
    s = scale.astype(jnp.float32)[None, :, None, None]
    z = zero_point.astype(jnp.float32)[None, :, None, None]
    return ((x_int8.astype(jnp.float32) - z) * s).astype(out_dtype)


def _vmem_capacity_bytes():
    try:
        return int(pltpu.get_tpu_info().vmem_capacity_bytes)
    except Exception:
        return 64 * 1024 * 1024   # conservative fallback: v7x per-TensorCore VMEM


def unpack_tensors(x_int8, scale, zero_point, out_dtype=jnp.float32, *,
                   min_pallas_elems=1 << 19):
    """Dequantize an NCHW int8 tensor with per-channel scale / zero_point.

    x_int8:     (N, C, H, W) int8
    scale:      (C,) float32
    zero_point: (C,) float32
    out_dtype:  float32 (default, torch-faithful) or bfloat16 (fast path:
                cuts HBM write traffic ~2x; compute stays f32).
    min_pallas_elems: below this element count, dequantize in plain jnp
                (kernel launch overhead dominates tiny shapes).
    """
    N, C, H, W = x_int8.shape
    rows, cols = N * C, H * W
    out_bytes = jnp.dtype(out_dtype).itemsize

    # Tiny-tensor bypass.
    if rows * cols < min_pallas_elems:
        return _dequant_ref(x_int8, scale, zero_point, out_dtype)

    # --- Generation-gated VMEM budget ---------------------------------------
    vmem_cap = _vmem_capacity_bytes()
    # Budget for a single (in + out + params) tile; the pipeline double-buffers
    # it, so the runtime footprint is ~2x this.
    pair_budget = max(vmem_cap // 4, 8 * 1024 * 1024)
    vmem_limit = min((vmem_cap * 3) // 4, 100 * 1024 * 1024)

    # --- Tile sizing ---------------------------------------------------------
    # Column tile: lane-dense (multiple of 128), as wide as the budget allows
    # for a minimum-height (32-row) strip; if it covers all columns just use
    # the full (un-padded) lane extent (full-dim blocks are always legal).
    tc_cap = _floor_to(
        max((pair_budget // _SUB - _PARAM_ROW_BYTES) // (1 + out_bytes), _LANE),
        _LANE)
    TC = max(_LANE, min(_ceil_to(cols, _LANE), tc_cap))
    if TC >= cols:
        TC = cols

    # Row tile: whatever is left of the budget, multiple of 32 (int8 packing),
    # accounting for the lane-padded (TR, 2) params tile.
    row_bytes = TC * (1 + out_bytes) + _PARAM_ROW_BYTES
    TR = max(_SUB, _floor_to(pair_budget // row_bytes, _SUB))
    if TR >= rows:
        TR = rows

    # Keep >= ~8 grid steps so the DMA pipeline actually overlaps and v7x's
    # two TensorCores both get work; shrink rows first (keeps stores lane-dense).
    MIN_STEPS = 8

    def _steps(tr, tc):
        return pl.cdiv(rows, tr) * pl.cdiv(cols, tc)

    while _steps(TR, TC) < MIN_STEPS and TR > _SUB:
        TR = max(_SUB, _floor_to(TR // 2, _SUB))
    while _steps(TR, TC) < MIN_STEPS and TC > _LANE:
        TC = max(_LANE, _floor_to(TC // 2, _LANE))

    grid = (pl.cdiv(rows, TR), pl.cdiv(cols, TC))

    # --- Plain-JAX glue: flatten view + packed per-row params ---------------
    x2d = x_int8.reshape(rows, cols)                                   # free view
    params_c = jnp.stack([scale.astype(jnp.float32),
                          zero_point.astype(jnp.float32)], axis=-1)    # (C, 2)
    params = jnp.tile(params_c, (N, 1))                                # (rows, 2)

    out2d = pl.pallas_call(
        _dequant_kernel,
        out_shape=jax.ShapeDtypeStruct((rows, cols), out_dtype),
        grid_spec=pl.GridSpec(
            grid=grid,
            in_specs=[
                pl.BlockSpec((TR, TC), lambda i, j: (i, j)),
                pl.BlockSpec((TR, 2), lambda i, j: (i, 0)),
            ],
            out_specs=pl.BlockSpec((TR, TC), lambda i, j: (i, j)),
        ),
        compiler_params=pltpu.CompilerParams(
            dimension_semantics=("parallel", "parallel"),
            vmem_limit_bytes=vmem_limit,
        ),
        cost_estimate=pl.CostEstimate(
            flops=2 * rows * cols,
            transcendentals=0,
            bytes_accessed=rows * cols * (1 + out_bytes) + rows * 8,
        ),
    )(x2d, params)

    return out2d.reshape(N, C, H, W)


if __name__ == "__main__":
    key = jax.random.PRNGKey(0)
    N, C, H, W = 2, 4, 16, 16

    k_x, _ = jax.random.split(key)
    x_int8 = jax.random.randint(k_x, (N, C, H, W), minval=-128, maxval=128,
                                dtype=jnp.int32).astype(jnp.int8)
    # Deterministic per-channel quant params (synthetic; no checkpoint load).
    scale = jnp.array([0.05, 0.10, 0.20, 0.40], dtype=jnp.float32)
    zero_point = jnp.array([0.0, 1.0, -2.0, 3.0], dtype=jnp.float32)

    # Force the Pallas path even on this tiny test shape.
    out = unpack_tensors(x_int8, scale, zero_point, min_pallas_elems=0)
    out = jax.block_until_ready(out)

    ref = _dequant_ref(x_int8, scale, zero_point, jnp.float32)
    assert out.shape == (N, C, H, W) and out.dtype == jnp.float32
    assert jnp.allclose(out, ref, atol=1e-5, rtol=1e-5), "mismatch vs reference"

    # The default small-tensor bypass must agree as well.
    out_bypass = jax.block_until_ready(unpack_tensors(x_int8, scale, zero_point))
    assert jnp.allclose(out_bypass, ref, atol=1e-5, rtol=1e-5), "bypass mismatch"

    print("KERNEL_OK")
</pallas_src>

<mosaic_0001>
module attributes {stable_mosaic.version = 11 : i64} {
  func.func @_dequant_kernel(%arg0: i32, %arg1: i32, %arg2: memref<8x128xi8, #tpu.memory_space<vmem>>, %arg3: memref<8x2xf32, #tpu.memory_space<vmem>>, %arg4: memref<8x128xf32, #tpu.memory_space<vmem>>) attributes {dimension_semantics = [#tpu.dimension_semantics<parallel>, #tpu.dimension_semantics<parallel>], iteration_bounds = array<i64: 1, 2>, scalar_prefetch = 0 : i64, scratch_operands = 0 : i64, tpu.core_type = #tpu.core_type<tc>, window_params = [{transform_indices = @transform_0, window_bounds = array<i64: 8, 128>}, {transform_indices = @transform_1, window_bounds = array<i64: 8, 2>}, {transform_indices = @transform_2, window_bounds = array<i64: 8, 128>}]} {
    %c0 = arith.constant 0 : index
    %c0_0 = arith.constant 0 : index
    %0 = vector.load %arg2[%c0, %c0_0] : memref<8x128xi8, #tpu.memory_space<vmem>>, vector<8x128xi8>
    %1 = arith.sitofp %0 : vector<8x128xi8> to vector<8x128xf32>
    %c0_1 = arith.constant 0 : index
    %c0_2 = arith.constant 0 : index
    %2 = vector.load %arg3[%c0_1, %c0_2] : memref<8x2xf32, #tpu.memory_space<vmem>>, vector<8x2xf32>
    %3 = vector.extract_strided_slice %2 {offsets = [0, 0], sizes = [8, 1], strides = [1, 1]} : vector<8x2xf32> to vector<8x1xf32>
    %4 = vector.extract_strided_slice %2 {offsets = [0, 1], sizes = [8, 1], strides = [1, 1]} : vector<8x2xf32> to vector<8x1xf32>
    %5 = vector.broadcast %4 : vector<8x1xf32> to vector<8x128xf32>
    %6 = arith.subf %1, %5 : vector<8x128xf32>
    %7 = vector.broadcast %3 : vector<8x1xf32> to vector<8x128xf32>
    %8 = arith.mulf %6, %7 : vector<8x128xf32>
    %c0_3 = arith.constant 0 : index
    %c0_4 = arith.constant 0 : index
    %9 = vector.load %arg4[%c0_3, %c0_4] : memref<8x128xf32, #tpu.memory_space<vmem>>, vector<8x128xf32>
    tpu.vector_store %arg4[%c0_3, %c0_4], %8 {strides = array<i32>} : memref<8x128xf32, #tpu.memory_space<vmem>>, vector<8x128xf32>,
    return
  }
  func.func @transform_0(%arg0: i32, %arg1: i32) -> (i32, i32) {
    %c0_i32 = arith.constant 0 : i32
    return %arg0, %arg1 : i32, i32
  }
  func.func @transform_1(%arg0: i32, %arg1: i32) -> (i32, i32) {
    %c0_i32 = arith.constant 0 : i32
    %c0_i32_0 = arith.constant 0 : i32
    return %arg0, %c0_i32 : i32, i32
  }
  func.func @transform_2(%arg0: i32, %arg1: i32) -> (i32, i32) {
    %c0_i32 = arith.constant 0 : i32
    return %arg0, %arg1 : i32, i32
  }
}

</mosaic_0001>

<llo_original>
// kernel: tpu_custom_call.1
$region0: #{tpu_custom_call.1}
  #allocation0 [shape = 'u32[]', space=smem, size = 0x4, offset = 0x4, fixed_abs, tag = 'smem constant byte address 0x4 - core index']
  #allocation1 [shape = 'u32[144,128]{1,0:T(1,128)}', space=vmem, size = 0x12000, scoped, tag = 'internal scratch']
  %s0 = inlined_call_operand.vmem [shape: s8[8,256], index: 0, kind: input, shape index: {}]
  %s1 = inlined_call_operand.vmem [shape: f32[8,2], index: 1, kind: input, shape index: {}]
  %s2 = inlined_call_operand.hbm [shape: f32[8,256], index: 2, kind: output, shape index: {}]
  %s3 = sld [smem:[#allocation0]]
  $region41: #{tpu_custom_call.1} parent=0
    _
  %s5 = ssub.s32 1, %s3
  %s6 = scalar_select 0, %s5, %s3
  $region1: #{tpu_custom_call.1} parent=0
    #allocation2 [shape = 'u8[8192]{0}', space=vmem, size = 0x2000, scoped, tag = 'output window, operand 0']
    #allocation3 [shape = 's32[2]{0}', space=sflag, size = 0x8, scoped, tag = 'scoped memory for tpu_custom_call.1']
    %7 = vsyncpa [#allocation3], 0
    %s8 = scalar_lea.sflag [#allocation3], 1
    %9 = vsyncpa %s8, 0
    loop: start=0, step=1, limit=4
    $region2: #{tpu_custom_call.1} parent=1 // loop_pre_header
      _
    $region3: #{tpu_custom_call.1} parent=1 // loop_header
      %s11 = sphi 0, %s15
      %p12 = scmp.ge.s32.totalorder %s11, 4
      %s18 = sphi 0, %s30
      %s19 = sphi 0, %s26
      %s20 = sphi 0, %s18
      %s21 = sphi 0, %s19
      %s22 = sphi 0, %s20
      %s23 = sphi 0, %s21
      %s35 = sphi 0, %s37
      %s38 = sphi 0, %s35
      %s39 = sphi 0, %s38
      %s55 = sphi 0, %s39
      %s61 = sphi 0, %s63
      %s64 = sphi 0, %s61
      %s65 = sphi 0, %s64
      %s81 = sphi 0, %s65
      %s89 = sphi 0, %s91
      %s92 = sphi 0, %s89
      %s93 = sphi 0, %s92
      %s109 = sphi 0, %s93
    $region4: #{tpu_custom_call.1} parent=1 // loop_header_branch
      %14 = sbr.rel (%p12) target = $region8
    $region5: #{tpu_custom_call.1} parent=1 // loop_body
      %s16 = ssub.s32 %s11, 1
      %s17 = ssub.s32 %s11, 2
      %s24 = sadd.s32 1, %s19
      %p25 = scmp.ge.s32.totalorder %s24, 2
      %s26 = scalar_select %p25, 0, %s24
      %s27 = sadd.s32 1, %s18
      %s28 = scalar_select %p25, %s27, %s18
      %p29 = scmp.ge.s32.totalorder %s28, 1
      %s30 = scalar_select %p29, 0, %s28
      %s31 = ssub.s32 %s18, %s30
      %s32 = ssub.s32 %s19, %s26
      %s33 = sor.u32 %s31, %s32
      %p34 = scmp.eq.s32.totalorder %s33, 0
      %s36 = sadd.s32 %s35, 1
      %s37 = scalar_select %p34, %s35, %s36
      %p40 = pneg %p34
      %p41 = scmp.eq.s32.totalorder %s11, 1
      %p42 = por %p40, %p41
      %p43 = scmp.ne.s32.totalorder %s35, %s38
      %p44 = scmp.eq.s32.totalorder %s11, 0
      %p45 = por %p43, %p44
      %p46 = scmp.ne.s32.totalorder %s35, %s38
      %p47 = scmp.eq.s32.totalorder %s16, 1
      %p48 = por %p46, %p47
      %p49 = scmp.ne.s32.totalorder %s38, %s39
      %p50 = scmp.eq.s32.totalorder %s16, 0
      %p51 = por %p49, %p50
      %p52 = scmp.ne.s32.totalorder %s38, %s39
      %p53 = scmp.eq.s32.totalorder %s17, 1
      %p54 = por %p52, %p53
      %p56 = scmp.ne.s32.totalorder %s39, %s55
      %p57 = scmp.eq.s32.totalorder %s17, 0
      %p58 = por %p56, %p57
      %s59 = ssub.s32 %s18, %s30
      %p60 = scmp.eq.s32.totalorder %s59, 0
      %s62 = sadd.s32 %s61, 1
      %s63 = scalar_select %p60, %s61, %s62
      %p66 = pneg %p60
      %p67 = scmp.eq.s32.totalorder %s11, 1
      %p68 = por %p66, %p67
      %p69 = scmp.ne.s32.totalorder %s61, %s64
      %p70 = scmp.eq.s32.totalorder %s11, 0
      %p71 = por %p69, %p70
      %p72 = scmp.ne.s32.totalorder %s61, %s64
      %p73 = scmp.eq.s32.totalorder %s16, 1
      %p74 = por %p72, %p73
      %p75 = scmp.ne.s32.totalorder %s64, %s65
      %p76 = scmp.eq.s32.totalorder %s16, 0
      %p77 = por %p75, %p76
      %p78 = scmp.ne.s32.totalorder %s64, %s65
      %p79 = scmp.eq.s32.totalorder %s17, 1
      %p80 = por %p78, %p79
      %p82 = scmp.ne.s32.totalorder %s65, %s81
      %p83 = scmp.eq.s32.totalorder %s17, 0
      %p84 = por %p82, %p83
      %s85 = ssub.s32 %s18, %s30
      %s86 = ssub.s32 %s19, %s26
      %s87 = sor.u32 %s85, %s86
      %p88 = scmp.eq.s32.totalorder %s87, 0
      %s90 = sadd.s32 %s89, 1
      %s91 = scalar_select %p88, %s89, %s90
      %p94 = pneg %p88
      %p95 = scmp.eq.s32.totalorder %s11, 1
      %p96 = por %p94, %p95
      %p97 = scmp.ne.s32.totalorder %s89, %s92
      %p98 = scmp.eq.s32.totalorder %s11, 0
      %p99 = por %p97, %p98
      %p100 = scmp.ne.s32.totalorder %s89, %s92
      %p101 = scmp.eq.s32.totalorder %s16, 1
      %p102 = por %p100, %p101
      %p103 = scmp.ne.s32.totalorder %s92, %s93
      %p104 = scmp.eq.s32.totalorder %s16, 0
      %p105 = por %p103, %p104
      %p106 = scmp.ne.s32.totalorder %s92, %s93
      %p107 = scmp.eq.s32.totalorder %s17, 1
      %p108 = por %p106, %p107
      %p110 = scmp.ne.s32.totalorder %s93, %s109
      %p111 = scmp.eq.s32.totalorder %s17, 0
      %p112 = por %p110, %p111
      %p113 = scmp.le.s32.totalorder 1, %s11
      %p114 = scmp.lt.s32.totalorder %s11, 3
      %p115 = pnand %p113, %p114
      %p116 = pneg %p115
      // Predicated region
      $region9: #{tpu_custom_call.1} parent=5 // pred_check
        _
      $region10: #{tpu_custom_call.1} parent=5 // pred_check_branch
        %118 = sbr.rel (%p115) target = $region12
      $region11: #{tpu_custom_call.1} parent=5 // pred_region
        %s119 = ssub.s32 %s11, 1
        // Predicated region
        $region13: #{tpu_custom_call.1} parent=11 // pred_check
          %p120 = pneg %p77
        $region14: #{tpu_custom_call.1} parent=11 // pred_check_branch
          %122 = sbr.rel (%p120) target = $region16
        $region15: #{tpu_custom_call.1} parent=11 // pred_region
          %p123 = scmp.lt.s32.totalorder %s20, 0
          %s124 = scalar_select %p123, %s20, 0
          %s125 = smul.addr %s124, 8
          %s126 = scalar_lea.vmem %s1, %s125
        $region16: #{tpu_custom_call.1} parent=11 // pred_fallthru
          _
      $region12: #{tpu_custom_call.1} parent=5 // pred_fallthru
        _
      %p127 = scmp.lt.s32.totalorder %s11, 2
      // Predicated region
      $region17: #{tpu_custom_call.1} parent=5 // pred_check
        %p128 = pneg %p127
      $region18: #{tpu_custom_call.1} parent=5 // pred_check_branch
        %130 = sbr.rel (%p128) target = $region20
      $region19: #{tpu_custom_call.1} parent=5 // pred_region
        // Predicated region
        $region21: #{tpu_custom_call.1} parent=19 // pred_check
          %p131 = pneg %p45
        $region22: #{tpu_custom_call.1} parent=19 // pred_check_branch
          %133 = sbr.rel (%p131) target = $region24
        $region23: #{tpu_custom_call.1} parent=19 // pred_region
          %p134 = scmp.lt.s32.totalorder %s18, 0
          %s135 = scalar_select %p134, %s18, 0
          %p136 = scmp.lt.s32.totalorder %s19, 1
          %s137 = scalar_select %p136, %s19, 1
          %s138 = smul.addr %s135, 2
          %s139 = sadd.s32 %s137, %s138
          %s140 = smul.addr %s139, 2
          %s141 = scalar_lea.vmem %s0, %s140
        $region24: #{tpu_custom_call.1} parent=19 // pred_fallthru
          _
      $region20: #{tpu_custom_call.1} parent=5 // pred_fallthru
        _
      %p142 = scmp.le.s32.totalorder 1, %s11
      %p143 = scmp.lt.s32.totalorder %s11, 3
      %p144 = pnand %p142, %p143
      %p145 = pneg %p144
      // Predicated region
      $region25: #{tpu_custom_call.1} parent=5 // pred_check
        _
      $region26: #{tpu_custom_call.1} parent=5 // pred_check_branch
        %147 = sbr.rel (%p144) target = $region28
      $region27: #{tpu_custom_call.1} parent=5 // pred_region
        %s148 = ssub.s32 %s11, 1
        %p149 = scmp.lt.s32.totalorder %s20, 0
        %s150 = scalar_select %p149, %s20, 0
        %p151 = scmp.lt.s32.totalorder %s21, 1
        %s152 = scalar_select %p151, %s21, 1
        %s153 = smul.addr %s150, 2
        %s154 = sadd.s32 %s152, %s153
        %s155 = smul.addr %s154, 2
        %s156 = scalar_lea.vmem %s0, %s155
        %p157 = pneg %p51
        %p158 = pneg %p48
        %p159 = scmp.lt.s32.totalorder %s20, 0
        %s160 = scalar_select %p159, %s20, 0
        %s161 = smul.addr %s160, 8
        %s162 = scalar_lea.vmem %s1, %s161
        %p163 = pneg %p77
        %p164 = pneg %p74
        %p165 = pneg %p105
        %p166 = pneg %p102
        %s167 = sand.u32 %s92, 1
        %s168 = scalar_lea.sflag [#allocation3], %s167
        %s169 = sand.u32 %s92, 1
        %s170 = smul.addr %s169, 8
        %s171 = scalar_lea.vmem [#allocation2], %s170
        %p172 = scmp.lt.s32.totalorder %s20, 0
        %s173 = scalar_select %p172, %s20, 0
        %p174 = scmp.lt.s32.totalorder %s21, 1
        %s175 = scalar_select %p174, %s21, 1
        %s176 = smul.addr %s173, 2
        %s177 = sadd.s32 %s175, %s176
        %s178 = smul.addr %s177, 2
        %s179 = scalar_lea.vmem %s0, %s178
        %p180 = scmp.lt.s32.totalorder %s20, 0
        %s181 = scalar_select %p180, %s20, 0
        %s182 = smul.addr %s181, 8
        %s183 = scalar_lea.vmem %s1, %s182
        %v184 = vld [vmem:[%s179] sm:$0x3]
        %v185 = vunpack.c.0.s8 %v184
        %v186 = vcvt.s32.f32 %v185
        %v187 = vld [vmem:[%s183] sm:$0xff]
        %189 = vset.pattern.permute.xlu0 1
        %190 = vperm.xlu0 %189, %v187
        %v191 = vpop.permute.xlu0 %190
        %v193 = vsub.f32 %v186, %v191
        %194 = vset.pattern.permute.xlu0 0
        %195 = vperm.xlu0 %194, %v187
        %v196 = vpop.permute.xlu0 %195
        %v198 = vmul.f32 %v193, %v196
        %199 = vst [vmem:[%s171] sm:$0xff] %v198
        %s200 = sand.u32 %s92, 1
        %s201 = scalar_lea.sflag [#allocation3], %s200
        %s202 = sand.u32 %s92, 1
        %s203 = smul.addr %s202, 8
        %s204 = scalar_lea.vmem [#allocation2], %s203
        // Predicated region
        $region29: #{tpu_custom_call.1} parent=27 // pred_check
          %p205 = pneg %p102
        $region30: #{tpu_custom_call.1} parent=27 // pred_check_branch
          %207 = sbr.rel (%p205) target = $region32
        $region31: #{tpu_custom_call.1} parent=27 // pred_region
          %s209 = ssub.s32 128, 128
          %210 = vsyncadd %s201, %s209
          %s211 = smul.addr %s20, 2
          %s212 = sadd.s32 %s21, %s211
          %s213 = smul.addr %s212, 128
          %s214 = scalar_lea.hbm %s2, %s213
          %s216 = sshll.u32 %s204, 4
          %s217 = int_to_ptr.vmem [resolvable:$true] %s216
          %219 = dma.vmem_to_hbm [thread:$0]  %s217, 128, %s214, %s201
        $region32: #{tpu_custom_call.1} parent=27 // pred_fallthru
          _
      $region28: #{tpu_custom_call.1} parent=5 // pred_fallthru
        _
      %p220 = scmp.le.s32.totalorder 2, %s11
      // Predicated region
      $region33: #{tpu_custom_call.1} parent=5 // pred_check
        %p221 = pneg %p220
      $region34: #{tpu_custom_call.1} parent=5 // pred_check_branch
        %223 = sbr.rel (%p221) target = $region36
      $region35: #{tpu_custom_call.1} parent=5 // pred_region
        %s224 = ssub.s32 %s11, 2
        // Predicated region
        $region37: #{tpu_custom_call.1} parent=35 // pred_check
          %p225 = pneg %p108
        $region38: #{tpu_custom_call.1} parent=35 // pred_check_branch
          %227 = sbr.rel (%p225) target = $region40
        $region39: #{tpu_custom_call.1} parent=35 // pred_region
          %s228 = sand.u32 %s93, 1
          %s229 = scalar_lea.sflag [#allocation3], %s228
          %s230 = sand.u32 %s93, 1
          %s231 = smul.addr %s230, 8
          %s232 = scalar_lea.vmem [#allocation2], %s231
          %233 = dma.done %s229, 128
        $region40: #{tpu_custom_call.1} parent=35 // pred_fallthru
          _
      $region36: #{tpu_custom_call.1} parent=5 // pred_fallthru
        _
    $region6: #{tpu_custom_call.1} parent=1 // loop_footer
      %s15 = sadd.s32 1, %s11
    $region7: #{tpu_custom_call.1} parent=1 // loop_footer_branch
      %10 = sbr.rel target = $region3
    $region8: #{tpu_custom_call.1} parent=1 // loop_exit
      _
    %234 = vsyncpa [#allocation3], 1
    %s235 = scalar_lea.sflag [#allocation3], 1
    %236 = vsyncpa %s235, 1

</llo_original>
